<compile_context>
chip_gen: v5e
topology: v5e:2x2
jax: 0.10.0
libtpu: 0.0.40
codegen_flags: <defaults>
</compile_context>

<pallas_src>
import functools

import jax
import jax.numpy as jnp
from jax.experimental import pallas as pl
from jax.experimental.pallas import tpu as pltpu


# ---------------------------------------------------------------------------
# Kernels
# ---------------------------------------------------------------------------

def _partial_scores_kernel(z_ref, w1_ref, b1_ref, part_ref, *, block_n, n_valid, mask_tail):
    """Per-tile sum over nodes of tanh(z2 @ W1_blockdiag + b1_tiled) -> (1, 1, M*H) f32."""
    act = jnp.dot(z_ref[...], w1_ref[...],
                  preferred_element_type=jnp.float32)            # (bn, M*H) f32, MXU
    act = jnp.tanh(act + b1_ref[...].astype(jnp.float32))        # tanh on the EUP
    if mask_tail:  # zero out zero-padded node rows (they would contribute tanh(b1))
        row = pl.program_id(0) * block_n + jax.lax.broadcasted_iota(jnp.int32, act.shape, 0)
        act = jnp.where(row < n_valid, act, 0.0)
    part_ref[0] = jnp.sum(act, axis=0, keepdims=True)            # (1, M*H)


def _weighted_sum_matmul_kernel(z_ref, s_ref, out_ref):
    """out = z3_tile @ S (beta-scaled selection matrix); fully lane-dense in and out."""
    out_ref[...] = jnp.dot(z_ref[...], s_ref[...],
                           preferred_element_type=jnp.float32).astype(out_ref.dtype)
    # TODO(synk): on v5e with f32 inputs the folded matmul (~64 flops/byte) is near the f32
    # MXU roofline; prefer the FMA path or a bf16 cast of z/S there.


def _weighted_sum_fma_kernel(beta_ref, z_ref, out_ref, *, num_meta, d):
    """out[n, :] = sum_m beta[m] * z2[n, m*D:(m+1)*D]; used when D is already lane-dense."""
    acc = beta_ref[0] * z_ref[:, 0:d].astype(jnp.float32)
    for m_idx in range(1, num_meta):                              # M small & static -> unrolled
        acc = acc + beta_ref[m_idx] * z_ref[:, m_idx * d:(m_idx + 1) * d].astype(jnp.float32)
    out_ref[...] = acc.astype(out_ref.dtype)


# ---------------------------------------------------------------------------
# Wrapper
# ---------------------------------------------------------------------------

def _cdiv(a, b):
    return (a + b - 1) // b


def _round_up(x, m):
    return _cdiv(x, m) * m


def _round_down(x, m):
    return max(m, (x // m) * m)


def _vmem_capacity_bytes():
    try:
        return int(pltpu.get_tpu_info().vmem_capacity_bytes)
    except Exception:
        return 64 * 1024 * 1024          # conservative default (v7x per-core VMEM)


def semantic_attention(z, w1, b1, w2, *, block_n=None):
    n, m, d = z.shape
    d_in, hidden = w1.shape
    assert d_in == d and b1.shape == (1, hidden) and w2.shape == (hidden, 1)

    isz = z.dtype.itemsize

    # Lane-fold factor so Pass 2's input/output tiles are 128-lane dense when D < 128.
    k = (128 // d) if (d < 128 and 128 % d == 0) else 1

    # ---- Node-tile size (rows of z per grid step), derived from PADDED footprints. ----
    row_z = _round_up(m * d, 128) * isz          # z tile bytes per node row (both passes)
    row_act = _round_up(m * hidden, 128) * 4     # Pass-1 f32 activation bytes per row
    row_out = (_round_up(k * d, 128) * isz) // k  # Pass-2 output bytes per original row
    if block_n is None:
        target = 4 * 1024 * 1024                 # ~4 MiB per double-buffered z tile
        bn = max(8 * k, target // max(row_z, 1))
        # keep >= ~8 grid steps when N allows so the "parallel" axis feeds both v7x TCs
        bn = min(bn, max(8 * k, _round_up(_cdiv(n, 8), 8 * k)))
    else:
        bn = max(8 * k, int(block_n))
    bn = _round_down(bn, 8 * k)                  # sublane- and fold-aligned
    n_pad = _round_up(n, bn)                     # zero-pad ragged N (masked in Pass 1)
    nt = n_pad // bn
    mask_tail = n_pad != n
    bn3 = bn // k                                # Pass-2 rows per step in the folded view

    # ---- Scoped-VMEM limit: real padded footprint + headroom, capped at ~60% of VMEM. ----
    w1bd_bytes = _round_up(m * d, 8) * _round_up(m * hidden, 128) * isz
    sel_bytes = _round_up(k * m * d, 8) * _round_up(k * d, 128) * isz
    est_p1 = 2 * bn * row_z + bn * row_act + 2 * w1bd_bytes + 2 * row_act
    est_p2 = 2 * bn * row_z + bn3 * _round_up(k * d, 128) * 4 + 2 * bn * row_out + 2 * sel_bytes
    est = max(est_p1, est_p2)
    vmem_cap = _vmem_capacity_bytes()
    vmem_limit = min((3 * vmem_cap) // 5, max(32 << 20, est + (16 << 20)))
    vmem_limit = int(min(max(vmem_limit, est + (4 << 20)), vmem_cap - (4 << 20)))

    cparams = pltpu.CompilerParams(
        dimension_semantics=("parallel",),       # node tiles are independent
        vmem_limit_bytes=vmem_limit,
    )

    # ---- Wrapper-side layout: lane-dense z view + block-diagonal W1 (in z's dtype). ----
    wdt = z.dtype
    # W1_bd[m_i*D + d, m_j*H + h] = W1[d, h] if m_i == m_j else 0
    # TODO(synk): for large M*H (>~256 in f32) the M-fold flop blow-up of the block-diagonal
    # form can turn Pass 1 MXU-bound on v5e; fall back to an (N*M, D) layout there.
    w1_bd = jnp.einsum("pq,dh->pdqh", jnp.eye(m, dtype=wdt), w1.astype(wdt)
                       ).reshape(m * d, m * hidden)
    b1_t = jnp.tile(b1.astype(wdt), (1, m))                       # (1, M*H)

    z2 = z.reshape(n, m * d)
    if mask_tail:
        z2 = jnp.pad(z2, ((0, n_pad - n), (0, 0)))

    # ---- Pass 1: per-tile partial sums of tanh(z @ W1 + b1), lane-dense in and out. ----
    partials = pl.pallas_call(
        functools.partial(_partial_scores_kernel,
                          block_n=bn, n_valid=n, mask_tail=mask_tail),
        out_shape=jax.ShapeDtypeStruct((nt, 1, m * hidden), jnp.float32),
        grid=(nt,),
        in_specs=[
            pl.BlockSpec((bn, m * d), lambda i: (i, 0)),
            pl.BlockSpec((m * d, m * hidden), lambda i: (0, 0)),
            pl.BlockSpec((1, m * hidden), lambda i: (0, 0)),
        ],
        out_specs=pl.BlockSpec((1, 1, m * hidden), lambda i: (i, 0, 0)),
        compiler_params=cparams,
    )(z2, w1_bd, b1_t)

    # ---- Finalize in plain JAX (few KiB; avoids a serialized kernel launch). ----
    hbar = partials.reshape(nt, m * hidden).sum(axis=0).reshape(m, hidden) * (1.0 / n)
    wvec = hbar @ w2.astype(jnp.float32)                          # (M, 1)
    beta = jax.nn.softmax(wvec, axis=0)                           # (M, 1) f32

    # ---- Pass 2: out = sum_m beta[m] * z[:, m, :], streamed over node tiles. ----
    if k > 1:
        # Fold k node rows into lanes: out viewed (N/k, k*D), z viewed (N/k, k*M*D).
        z3 = z2.reshape(n_pad // k, k * m * d)
        sel = jnp.kron(jnp.eye(k, dtype=jnp.float32),
                       jnp.kron(beta, jnp.eye(d, dtype=jnp.float32))).astype(z.dtype)
        out3 = pl.pallas_call(
            _weighted_sum_matmul_kernel,
            out_shape=jax.ShapeDtypeStruct((n_pad // k, k * d), z.dtype),
            grid=(nt,),
            in_specs=[
                pl.BlockSpec((bn3, k * m * d), lambda i: (i, 0)),
                pl.BlockSpec((k * m * d, k * d), lambda i: (0, 0)),
            ],
            out_specs=pl.BlockSpec((bn3, k * d), lambda i: (i, 0)),
            compiler_params=cparams,
        )(z3, sel)
        out = out3.reshape(n_pad, d)
    else:
        # D >= 128 (or awkward D): output is already lane-dense; beta scalars live in SMEM.
        out = pl.pallas_call(
            functools.partial(_weighted_sum_fma_kernel, num_meta=m, d=d),
            out_shape=jax.ShapeDtypeStruct((n_pad, d), z.dtype),
            grid=(nt,),
            in_specs=[
                pl.BlockSpec(memory_space=pltpu.MemorySpace.SMEM),
                pl.BlockSpec((bn, m * d), lambda i: (i, 0)),
            ],
            out_specs=pl.BlockSpec((bn, d), lambda i: (i, 0)),
            compiler_params=cparams,
        )(beta.reshape(m), z2)

    return out[:n] if mask_tail else out


def semantic_attention_ref(z, w1, b1, w2):
    # Pure-JAX reference mirroring the PyTorch module.
    s = jnp.tanh(jnp.einsum("nmd,dh->nmh", z, w1) + b1)           # (N, M, H)
    s = jnp.einsum("nmh,ho->nmo", s, w2)                          # (N, M, 1)
    w = s.mean(axis=0)                                            # (M, 1)
    beta = jax.nn.softmax(w, axis=0)                              # (M, 1)
    return jnp.sum(beta[None, :, :] * z, axis=1)                  # (N, D)


if __name__ == "__main__":
    # Small-but-realistic shapes: 256 nodes, 4 metapaths, in_size 32, hidden 32.
    N, M, D, H = 256, 4, 32, 32

    key = jax.random.PRNGKey(0)
    kz, kw1, kb1, kw2 = jax.random.split(key, 4)

    z = jax.random.normal(kz, (N, M, D), dtype=jnp.float32)

    # Deterministic parameter init (uniform +/- 1/sqrt(fan_in), like nn.Linear).
    lim1 = 1.0 / (D ** 0.5)
    lim2 = 1.0 / (H ** 0.5)
    w1 = jax.random.uniform(kw1, (D, H), minval=-lim1, maxval=lim1, dtype=jnp.float32)
    b1 = jax.random.uniform(kb1, (1, H), minval=-lim1, maxval=lim1, dtype=jnp.float32)
    w2 = jax.random.uniform(kw2, (H, 1), minval=-lim2, maxval=lim2, dtype=jnp.float32)

    # block_n=64 -> a 4-step grid, exercising the tiled / pipelined path.
    out = semantic_attention(z, w1, b1, w2, block_n=64)
    out = jax.block_until_ready(out)

    ref = semantic_attention_ref(z, w1, b1, w2)
    assert out.shape == (N, D)
    assert jnp.allclose(out, ref, atol=1e-5, rtol=1e-5), "Pallas output mismatch"

    print("KERNEL_OK")
</pallas_src>

<mosaic_0001>
module attributes {stable_mosaic.version = 11 : i64} {
  func.func @_partial_scores_kernel(%arg0: i32, %arg1: memref<64x128xf32, #tpu.memory_space<vmem>>, %arg2: memref<128x128xf32, #tpu.memory_space<vmem>>, %arg3: memref<1x128xf32, #tpu.memory_space<vmem>>, %arg4: memref<1x1x128xf32, #tpu.memory_space<vmem>>) attributes {dimension_semantics = [#tpu.dimension_semantics<parallel>], iteration_bounds = array<i64: 4>, scalar_prefetch = 0 : i64, scratch_operands = 0 : i64, tpu.core_type = #tpu.core_type<tc>, window_params = [{transform_indices = @transform_0, window_bounds = array<i64: 64, 128>}, {pipeline_mode = #tpu.pipeline_mode<synchronous>, transform_indices = @transform_1, window_bounds = array<i64: 128, 128>}, {pipeline_mode = #tpu.pipeline_mode<synchronous>, transform_indices = @transform_2, window_bounds = array<i64: 1, 128>}, {transform_indices = @transform_3, window_bounds = array<i64: 1, 1, 128>}]} {
    %c0 = arith.constant 0 : index
    %c0_0 = arith.constant 0 : index
    %0 = vector.load %arg1[%c0, %c0_0] : memref<64x128xf32, #tpu.memory_space<vmem>>, vector<64x128xf32>
    %c0_1 = arith.constant 0 : index
    %c0_2 = arith.constant 0 : index
    %1 = vector.load %arg2[%c0_1, %c0_2] : memref<128x128xf32, #tpu.memory_space<vmem>>, vector<128x128xf32>
    %cst = arith.constant dense<0.000000e+00> : vector<64x128xf32>
    %2 = tpu.matmul %0, %1, %cst {dimension_numbers = #tpu.dot_dimension_numbers<[1], [0], [0], [1], [0, 0, 1, 1], [], []>} : vector<64x128xf32>, vector<128x128xf32>, vector<64x128xf32> -> vector<64x128xf32>
    %c0_3 = arith.constant 0 : index
    %c0_4 = arith.constant 0 : index
    %3 = vector.load %arg3[%c0_3, %c0_4] : memref<1x128xf32, #tpu.memory_space<vmem>>, vector<1x128xf32>
    %4 = vector.broadcast %3 : vector<1x128xf32> to vector<64x128xf32>
    %5 = arith.addf %2, %4 : vector<64x128xf32>
    %6 = math.tanh %5 : vector<64x128xf32>
    %cst_5 = arith.constant dense<0.000000e+00> : vector<128xf32>
    %7 = vector.multi_reduction <add>, %6, %cst_5 [0] : vector<64x128xf32> to vector<128xf32>
    %8 = vector.shape_cast %7 : vector<128xf32> to vector<1x128xf32>
    %c0_6 = arith.constant 0 : index
    %c0_7 = arith.constant 0 : index
    %c0_8 = arith.constant 0 : index
    %9 = vector.load %arg4[%c0_6, %c0_7, %c0_8] : memref<1x1x128xf32, #tpu.memory_space<vmem>>, vector<1x1x128xf32>
    %10 = vector.shape_cast %9 : vector<1x1x128xf32> to vector<1x128xf32>
    %11 = vector.shape_cast %8 : vector<1x128xf32> to vector<1x1x128xf32>
    tpu.vector_store %arg4[%c0_6, %c0_7, %c0_8], %11 {strides = array<i32>} : memref<1x1x128xf32, #tpu.memory_space<vmem>>, vector<1x1x128xf32>,
    return
  }
  func.func @transform_0(%arg0: i32) -> (i32, i32) {
    %c0_i32 = arith.constant 0 : i32
    %c0_i32_0 = arith.constant 0 : i32
    return %arg0, %c0_i32 : i32, i32
  }
  func.func @transform_1(%arg0: i32) -> (i32, i32) {
    %c0_i32 = arith.constant 0 : i32
    %c0_i32_0 = arith.constant 0 : i32
    %c0_i32_1 = arith.constant 0 : i32
    return %c0_i32, %c0_i32_0 : i32, i32
  }
  func.func @transform_2(%arg0: i32) -> (i32, i32) {
    %c0_i32 = arith.constant 0 : i32
    %c0_i32_0 = arith.constant 0 : i32
    %c0_i32_1 = arith.constant 0 : i32
    return %c0_i32, %c0_i32_0 : i32, i32
  }
  func.func @transform_3(%arg0: i32) -> (i32, i32, i32) {
    %c0_i32 = arith.constant 0 : i32
    %c0_i32_0 = arith.constant 0 : i32
    %c0_i32_1 = arith.constant 0 : i32
    return %arg0, %c0_i32, %c0_i32_0 : i32, i32, i32
  }
}

</mosaic_0001>

<llo_original>
// kernel: tpu_custom_call.1
$region0: #{tpu_custom_call.1}
  #allocation0 [shape = 'u32[]', space=smem, size = 0x4, offset = 0x4, fixed_abs, tag = 'smem constant byte address 0x4 - core index']
  #allocation1 [shape = 'u32[72,128]{1,0:T(1,128)}', space=vmem, size = 0x9000, scoped, tag = 'internal scratch']
  %s0 = inlined_call_operand.hbm [shape: f32[256,128], index: 0, kind: input, shape index: {}]
  %s1 = inlined_call_operand.hbm [shape: f32[128,128], index: 1, kind: input, shape index: {}]
  %s2 = inlined_call_operand.vmem [shape: f32[1,128], index: 2, kind: input, shape index: {}]
  %s3 = inlined_call_operand.hbm [shape: f32[4,1,128], index: 3, kind: output, shape index: {}]
  %s4 = sld [smem:[#allocation0]]
  $region53: #{tpu_custom_call.1} parent=0
    _
  %s6 = ssub.s32 1, %s4
  %s7 = scalar_select 0, %s6, %s4
  $region1: #{tpu_custom_call.1} parent=0
    #allocation2 [shape = 'u8[65536]{0}', space=vmem, size = 0x10000, scoped, tag = 'input window, operand 0']
    #allocation3 [shape = 's32[2]{0}', space=sflag, size = 0x8, scoped, tag = 'scoped memory for tpu_custom_call.1']
    #allocation4 [shape = 's32[2]{0}', space=sflag, size = 0x8, scoped, tag = 'scoped memory for tpu_custom_call.1']
    #allocation5 [shape = 'u8[65536]{0}', space=vmem, size = 0x10000, scoped, tag = 'input window, operand 1, single buffered']
    #allocation6 [shape = 's32[1]{0}', space=sflag, size = 0x4, scoped, tag = 'scoped memory for tpu_custom_call.1']
    #allocation7 [shape = 'u8[1024]{0}', space=vmem, size = 0x400, scoped, tag = 'output window, operand 0']
    %8 = vsyncpa [#allocation3], 0
    %s9 = scalar_lea.sflag [#allocation3], 1
    %10 = vsyncpa %s9, 0
    %11 = vsyncpa [#allocation6], 0
    %12 = vsyncpa [#allocation4], 0
    %s13 = scalar_lea.sflag [#allocation4], 1
    %14 = vsyncpa %s13, 0
    loop: start=0, step=1, limit=6
    $region2: #{tpu_custom_call.1} parent=1 // loop_pre_header
      _
    $region3: #{tpu_custom_call.1} parent=1 // loop_header
      %s16 = sphi 0, %s20
      %p17 = scmp.ge.s32.totalorder %s16, 6
      %s26 = sphi 0, %s28
      %s29 = sphi 0, %s26
      %s30 = sphi 0, %s29
      %s46 = sphi 0, %s30
      %s50 = sphi 0, %s50
      %s52 = sphi 0, %s50
      %s53 = sphi 0, %s52
      %s67 = sphi 0, %s53
      %s71 = sphi 0, %s71
      %s73 = sphi 0, %s71
      %s74 = sphi 0, %s73
      %s88 = sphi 0, %s74
      %s94 = sphi 0, %s96
      %s97 = sphi 0, %s94
      %s98 = sphi 0, %s97
      %s114 = sphi 0, %s98
    $region4: #{tpu_custom_call.1} parent=1 // loop_header_branch
      %19 = sbr.rel (%p17) target = $region8
    $region5: #{tpu_custom_call.1} parent=1 // loop_body
      %s21 = ssub.s32 %s16, 1
      %s22 = ssub.s32 %s16, 2
      %s23 = sadd.s32 %s16, 1
      %s24 = ssub.s32 %s16, %s23
      %p25 = scmp.eq.s32.totalorder %s24, 0
      %s27 = sadd.s32 %s26, 1
      %s28 = scalar_select %p25, %s26, %s27
      %p31 = pneg %p25
      %p32 = scmp.eq.s32.totalorder %s16, 3
      %p33 = por %p31, %p32
      %p34 = scmp.ne.s32.totalorder %s26, %s29
      %p35 = scmp.eq.s32.totalorder %s16, 0
      %p36 = por %p34, %p35
      %p37 = scmp.ne.s32.totalorder %s26, %s29
      %p38 = scmp.eq.s32.totalorder %s21, 3
      %p39 = por %p37, %p38
      %p40 = scmp.ne.s32.totalorder %s29, %s30
      %p41 = scmp.eq.s32.totalorder %s21, 0
      %p42 = por %p40, %p41
      %p43 = scmp.ne.s32.totalorder %s29, %s30
      %p44 = scmp.eq.s32.totalorder %s22, 3
      %p45 = por %p43, %p44
      %p47 = scmp.ne.s32.totalorder %s30, %s46
      %p48 = scmp.eq.s32.totalorder %s22, 0
      %p49 = por %p47, %p48
      %s51 = sadd.s32 %s50, 1
      %p54 = scmp.eq.s32.totalorder %s16, 3
      %p55 = scmp.ne.s32.totalorder %s50, %s52
      %p56 = scmp.eq.s32.totalorder %s16, 0
      %p57 = por %p55, %p56
      %p58 = scmp.ne.s32.totalorder %s50, %s52
      %p59 = scmp.eq.s32.totalorder %s21, 3
      %p60 = por %p58, %p59
      %p61 = scmp.ne.s32.totalorder %s52, %s53
      %p62 = scmp.eq.s32.totalorder %s21, 0
      %p63 = por %p61, %p62
      %p64 = scmp.ne.s32.totalorder %s52, %s53
      %p65 = scmp.eq.s32.totalorder %s22, 3
      %p66 = por %p64, %p65
      %p68 = scmp.ne.s32.totalorder %s53, %s67
      %p69 = scmp.eq.s32.totalorder %s22, 0
      %p70 = por %p68, %p69
      %s72 = sadd.s32 %s71, 1
      %p75 = scmp.eq.s32.totalorder %s16, 3
      %p76 = scmp.ne.s32.totalorder %s71, %s73
      %p77 = scmp.eq.s32.totalorder %s16, 0
      %p78 = por %p76, %p77
      %p79 = scmp.ne.s32.totalorder %s71, %s73
      %p80 = scmp.eq.s32.totalorder %s21, 3
      %p81 = por %p79, %p80
      %p82 = scmp.ne.s32.totalorder %s73, %s74
      %p83 = scmp.eq.s32.totalorder %s21, 0
      %p84 = por %p82, %p83
      %p85 = scmp.ne.s32.totalorder %s73, %s74
      %p86 = scmp.eq.s32.totalorder %s22, 3
      %p87 = por %p85, %p86
      %p89 = scmp.ne.s32.totalorder %s74, %s88
      %p90 = scmp.eq.s32.totalorder %s22, 0
      %p91 = por %p89, %p90
      %s92 = ssub.s32 %s16, %s23
      %p93 = scmp.eq.s32.totalorder %s92, 0
      %s95 = sadd.s32 %s94, 1
      %s96 = scalar_select %p93, %s94, %s95
      %p99 = pneg %p93
      %p100 = scmp.eq.s32.totalorder %s16, 3
      %p101 = por %p99, %p100
      %p102 = scmp.ne.s32.totalorder %s94, %s97
      %p103 = scmp.eq.s32.totalorder %s16, 0
      %p104 = por %p102, %p103
      %p105 = scmp.ne.s32.totalorder %s94, %s97
      %p106 = scmp.eq.s32.totalorder %s21, 3
      %p107 = por %p105, %p106
      %p108 = scmp.ne.s32.totalorder %s97, %s98
      %p109 = scmp.eq.s32.totalorder %s21, 0
      %p110 = por %p108, %p109
      %p111 = scmp.ne.s32.totalorder %s97, %s98
      %p112 = scmp.eq.s32.totalorder %s22, 3
      %p113 = por %p111, %p112
      %p115 = scmp.ne.s32.totalorder %s98, %s114
      %p116 = scmp.eq.s32.totalorder %s22, 0
      %p117 = por %p115, %p116
      %p118 = scmp.le.s32.totalorder 1, %s16
      %p119 = scmp.lt.s32.totalorder %s16, 5
      %p120 = pnand %p118, %p119
      %p121 = pneg %p120
      // Predicated region
      $region9: #{tpu_custom_call.1} parent=5 // pred_check
        _
      $region10: #{tpu_custom_call.1} parent=5 // pred_check_branch
        %123 = sbr.rel (%p120) target = $region12
      $region11: #{tpu_custom_call.1} parent=5 // pred_region
        %s124 = ssub.s32 %s16, 1
        // Predicated region
        $region13: #{tpu_custom_call.1} parent=11 // pred_check
          %p125 = pneg %p63
        $region14: #{tpu_custom_call.1} parent=11 // pred_check_branch
          %127 = sbr.rel (%p125) target = $region16
        $region15: #{tpu_custom_call.1} parent=11 // pred_region
          %129 = vsyncadd [#allocation6], 0
          %s130 = sshll.u32 %s1, 4
          %s131 = int_to_ptr.hbm [resolvable:$true] %s130
          %s132 = sshll.u32 [#allocation5], 4
          %s133 = int_to_ptr.vmem [resolvable:$true] %s132
          %138 = dma.hbm_to_vmem [thread:$0]  %s131, 2048, %s133, [#allocation6], 128, 128, 8
        $region16: #{tpu_custom_call.1} parent=11 // pred_fallthru
          _
        // Predicated region
        $region17: #{tpu_custom_call.1} parent=11 // pred_check
          %p139 = pneg %p84
        $region18: #{tpu_custom_call.1} parent=11 // pred_check_branch
          %141 = sbr.rel (%p139) target = $region20
        $region19: #{tpu_custom_call.1} parent=11 // pred_region
          _
        $region20: #{tpu_custom_call.1} parent=11 // pred_fallthru
          _
      $region12: #{tpu_custom_call.1} parent=5 // pred_fallthru
        _
      %p142 = scmp.lt.s32.totalorder %s16, 4
      // Predicated region
      $region21: #{tpu_custom_call.1} parent=5 // pred_check
        %p143 = pneg %p142
      $region22: #{tpu_custom_call.1} parent=5 // pred_check_branch
        %145 = sbr.rel (%p143) target = $region24
      $region23: #{tpu_custom_call.1} parent=5 // pred_region
        // Predicated region
        $region25: #{tpu_custom_call.1} parent=23 // pred_check
          %p146 = pneg %p36
        $region26: #{tpu_custom_call.1} parent=23 // pred_check_branch
          %148 = sbr.rel (%p146) target = $region28
        $region27: #{tpu_custom_call.1} parent=23 // pred_region
          %s149 = sand.u32 %s26, 1
          %s150 = scalar_lea.sflag [#allocation3], %s149
          %s151 = sand.u32 %s26, 1
          %s152 = smul.addr %s151, 64
          %s153 = scalar_lea.vmem [#allocation2], %s152
          %s154 = smul.u32 8, %s16
          %156 = vsyncadd %s150, 0
          %s157 = smul.addr %s154, 8
          %s158 = scalar_lea.hbm %s0, %s157
          %s159 = sshll.u32 %s158, 4
          %s160 = int_to_ptr.hbm [resolvable:$true] %s159
          %s161 = sshll.u32 %s153, 4
          %s162 = int_to_ptr.vmem [resolvable:$true] %s161
          %167 = dma.hbm_to_vmem [thread:$0]  %s160, 1024, %s162, %s150, 128, 128, 8
        $region28: #{tpu_custom_call.1} parent=23 // pred_fallthru
          _
      $region24: #{tpu_custom_call.1} parent=5 // pred_fallthru
        _
      %p168 = scmp.le.s32.totalorder 1, %s16
      %p169 = scmp.lt.s32.totalorder %s16, 5
      %p170 = pnand %p168, %p169
      %p171 = pneg %p170
      // Predicated region
      $region29: #{tpu_custom_call.1} parent=5 // pred_check
        _
      $region30: #{tpu_custom_call.1} parent=5 // pred_check_branch
        %173 = sbr.rel (%p170) target = $region32
      $region31: #{tpu_custom_call.1} parent=5 // pred_region
        %s174 = ssub.s32 %s16, 1
        %s175 = sand.u32 %s29, 1
        %s176 = scalar_lea.sflag [#allocation3], %s175
        %s177 = sand.u32 %s29, 1
        %s178 = smul.addr %s177, 64
        %s179 = scalar_lea.vmem [#allocation2], %s178
        // Predicated region
        $region33: #{tpu_custom_call.1} parent=31 // pred_check
          %p180 = pneg %p42
        $region34: #{tpu_custom_call.1} parent=31 // pred_check_branch
          %182 = sbr.rel (%p180) target = $region36
        $region35: #{tpu_custom_call.1} parent=31 // pred_region
          %184 = dma.done %s176, 1024
        $region36: #{tpu_custom_call.1} parent=31 // pred_fallthru
          _
        // Predicated region
        $region37: #{tpu_custom_call.1} parent=31 // pred_check
          %p185 = pneg %p63
        $region38: #{tpu_custom_call.1} parent=31 // pred_check_branch
          %187 = sbr.rel (%p185) target = $region40
        $region39: #{tpu_custom_call.1} parent=31 // pred_region
          %189 = dma.done [#allocation6], 2048
        $region40: #{tpu_custom_call.1} parent=31 // pred_fallthru
          _
        %s190 = sand.u32 %s29, 1
        %s191 = scalar_lea.sflag [#allocation3], %s190
        %s192 = sand.u32 %s29, 1
        %s193 = smul.addr %s192, 64
        %s194 = scalar_lea.vmem [#allocation2], %s193
        %p195 = pneg %p42
        %p196 = pneg %p39
        %p197 = pneg %p63
        %p198 = pneg %p60
        %p199 = pneg %p84
        %p200 = pneg %p81
        %p201 = pneg %p110
        %p202 = pneg %p107
        %s203 = sand.u32 %s97, 1
        %s204 = scalar_lea.sflag [#allocation4], %s203
        %s205 = sand.u32 %s97, 1
        %s206 = scalar_lea.vmem [#allocation7], %s205
        %s207 = smul.u32 8, %s21
        %v208 = vld [vmem:[%s179] sm:$0xff]
        %v209 = vld [vmem:[%s179 + $0x8] sm:$0xff]
        %v210 = vld [vmem:[%s179 + $0x10] sm:$0xff]
        %v211 = vld [vmem:[%s179 + $0x18] sm:$0xff]
        %v212 = vld [vmem:[%s179 + $0x20] sm:$0xff]
        %v213 = vld [vmem:[%s179 + $0x28] sm:$0xff]
        %v214 = vld [vmem:[%s179 + $0x30] sm:$0xff]
        %v215 = vld [vmem:[%s179 + $0x38] sm:$0xff]
        %v216 = vld [vmem:[#allocation5] sm:$0xff]
        %v217 = vld [vmem:[#allocation5 + $0x8] sm:$0xff]
        %v218 = vld [vmem:[#allocation5 + $0x10] sm:$0xff]
        %v219 = vld [vmem:[#allocation5 + $0x18] sm:$0xff]
        %v220 = vld [vmem:[#allocation5 + $0x20] sm:$0xff]
        %v221 = vld [vmem:[#allocation5 + $0x28] sm:$0xff]
        %v222 = vld [vmem:[#allocation5 + $0x30] sm:$0xff]
        %v223 = vld [vmem:[#allocation5 + $0x38] sm:$0xff]
        %v224 = vld [vmem:[#allocation5 + $0x40] sm:$0xff]
        %v225 = vld [vmem:[#allocation5 + $0x48] sm:$0xff]
        %v226 = vld [vmem:[#allocation5 + $0x50] sm:$0xff]
        %v227 = vld [vmem:[#allocation5 + $0x58] sm:$0xff]
        %v228 = vld [vmem:[#allocation5 + $0x60] sm:$0xff]
        %v229 = vld [vmem:[#allocation5 + $0x68] sm:$0xff]
        %v230 = vld [vmem:[#allocation5 + $0x70] sm:$0xff]
        %v231 = vld [vmem:[#allocation5 + $0x78] sm:$0xff]
        %v232 = vld [vmem:[%s2] sm:$0x1]
        %v234 = vperm.slane %v232, 0
        %236 = vmatpush.msra.mxu0 %v231
        %237 = vmatpush.msra.mxu0 %v230
        %238 = vmatpush.msra.mxu0 %v229
        %239 = vmatpush.msra.mxu0 %v228
        %240 = vmatpush.msra.mxu0 %v227
        %241 = vmatpush.msra.mxu0 %v226
        %242 = vmatpush.msra.mxu0 %v225
        %243 = vmatpush.msra.mxu0 %v224
        %244 = vmatpush.msra.mxu0 %v223
        %245 = vmatpush.msra.mxu0 %v222
        %246 = vmatpush.msra.mxu0 %v221
        %247 = vmatpush.msra.mxu0 %v220
        %248 = vmatpush.msra.mxu0 %v219
        %249 = vmatpush.msra.mxu0 %v218
        %250 = vmatpush.msra.mxu0 %v217
        %251 = vmatpush.msra.mxu0 %v216
        %252 = vmatmul.f32.gmra.mxu0 %v208
        %v253 = vpop.f32.mrf.mxu0
        %v254 = vadd.f32 %v234, %v253
        %255 = vmatmul.f32.gmra.mxu0 %v209
        %v256 = vpop.f32.mrf.mxu0
        %v257 = vadd.f32 %v234, %v256
        %258 = vmatmul.f32.gmra.mxu0 %v210
        %v259 = vpop.f32.mrf.mxu0
        %v260 = vadd.f32 %v234, %v259
        %261 = vmatmul.f32.gmra.mxu0 %v211
        %v262 = vpop.f32.mrf.mxu0
        %v263 = vadd.f32 %v234, %v262
        %264 = vmatmul.f32.gmra.mxu0 %v212
        %v265 = vpop.f32.mrf.mxu0
        %v266 = vadd.f32 %v234, %v265
        %267 = vmatmul.f32.gmra.mxu0 %v213
        %v268 = vpop.f32.mrf.mxu0
        %v269 = vadd.f32 %v234, %v268
        %270 = vmatmul.f32.gmra.mxu0 %v214
        %v271 = vpop.f32.mrf.mxu0
        %v272 = vadd.f32 %v234, %v271
        %273 = vmatmul.f32.gmra.mxu0 %v215
        %v274 = vpop.f32.mrf.mxu0
        %v275 = vadd.f32 %v234, %v274
        %276 = vdwg.mxu0
        %v277 = vtanh.pop %v254
        %v278 = vtanh.pop %v257
        %v279 = vtanh.pop %v260
        %v280 = vtanh.pop %v263
        %v281 = vtanh.pop %v266
        %v282 = vtanh.pop %v269
        %v283 = vtanh.pop %v272
        %v284 = vtanh.pop %v275
        %v285 = vadd.f32 %v277, %v278
        %v286 = vadd.f32 %v285, %v279
        %v287 = vadd.f32 %v286, %v280
        %v288 = vadd.f32 %v287, %v281
        %v289 = vadd.f32 %v288, %v282
        %v290 = vadd.f32 %v289, %v283
        %v291 = vadd.f32 %v290, %v284
        %v292 = vrot.slane %v291, 4
        %v293 = vadd.f32 %v291, %v292
        %v294 = vrot.slane %v293, 2
        %v295 = vadd.f32 %v293, %v294
        %v296 = vrot.slane %v295, 1
        %v297 = vadd.f32 %v295, %v296
        %298 = vst [vmem:[%s206] sm:$0x1] %v297
        %s299 = sand.u32 %s97, 1
        %s300 = scalar_lea.sflag [#allocation4], %s299
        %s301 = sand.u32 %s97, 1
        %s302 = scalar_lea.vmem [#allocation7], %s301
        // Predicated region
        $region41: #{tpu_custom_call.1} parent=31 // pred_check
          %p303 = pneg %p107
        $region42: #{tpu_custom_call.1} parent=31 // pred_check_branch
          %305 = sbr.rel (%p303) target = $region44
        $region43: #{tpu_custom_call.1} parent=31 // pred_region
          %307 = vsyncadd %s300, 0
          %s308 = scalar_lea.hbm %s3, %s21
          %s310 = sshll.u32 %s302, 4
          %s311 = int_to_ptr.vmem [resolvable:$true] %s310
          %s312 = sshll.u32 %s308, 4
          %s313 = int_to_ptr.hbm [resolvable:$true] %s312
          %315 = dma.vmem_to_hbm [thread:$0]  %s311, 16, %s313, %s300
        $region44: #{tpu_custom_call.1} parent=31 // pred_fallthru
          _
      $region32: #{tpu_custom_call.1} parent=5 // pred_fallthru
        _
      %p316 = scmp.le.s32.totalorder 2, %s16
      // Predicated region
      $region45: #{tpu_custom_call.1} parent=5 // pred_check
        %p317 = pneg %p316
      $region46: #{tpu_custom_call.1} parent=5 // pred_check_branch
        %319 = sbr.rel (%p317) target = $region48
      $region47: #{tpu_custom_call.1} parent=5 // pred_region
        %s320 = ssub.s32 %s16, 2
        // Predicated region
        $region49: #{tpu_custom_call.1} parent=47 // pred_check
          %p321 = pneg %p113
        $region50: #{tpu_custom_call.1} parent=47 // pred_check_branch
          %323 = sbr.rel (%p321) target = $region52
        $region51: #{tpu_custom_call.1} parent=47 // pred_region
          %s324 = sand.u32 %s98, 1
          %s325 = scalar_lea.sflag [#allocation4], %s324
          %s326 = sand.u32 %s98, 1
          %s327 = scalar_lea.vmem [#allocation7], %s326
          %329 = dma.done %s325, 16
        $region52: #{tpu_custom_call.1} parent=47 // pred_fallthru
          _
      $region48: #{tpu_custom_call.1} parent=5 // pred_fallthru
        _
    $region6: #{tpu_custom_call.1} parent=1 // loop_footer
      %s20 = sadd.s32 1, %s16
    $region7: #{tpu_custom_call.1} parent=1 // loop_footer_branch
      %15 = sbr.rel target = $region3
    $region8: #{tpu_custom_call.1} parent=1 // loop_exit
      _
    %330 = vsyncpa [#allocation3], 1
    %s331 = scalar_lea.sflag [#allocation3], 1
    %332 = vsyncpa %s331, 1
    %333 = vsyncpa [#allocation6], 1
    %334 = vsyncpa [#allocation4], 1
    %s335 = scalar_lea.sflag [#allocation4], 1
    %336 = vsyncpa %s335, 1

</llo_original>
